<compile_context>
chip_gen: v5e
topology: v5e:2x2
jax: 0.10.0
libtpu: 0.0.40
codegen_flags: <defaults>
</compile_context>

<pallas_src>
import functools
import math

import jax
import jax.numpy as jnp
import numpy as np
from jax.experimental import pallas as pl
from jax.experimental.pallas import tpu as pltpu


def _xlogx(p):
    return 0.0 if p <= 0.0 else float(p) * math.log(p)


def _round_up(a, b):
    return (a + b - 1) // b * b


def _cdiv(a, b):
    return (a + b - 1) // b


def _vmem_capacity_bytes():
    try:
        info = pltpu.get_tpu_info()
        cap = getattr(info, "vmem_capacity_bytes", None)
        if cap:
            return int(cap)
    except Exception:
        pass
    return 64 * 1024 * 1024   # conservative: v7x per-TensorCore VMEM


def _label_smoothing_kernel(x_ref, t_ref, o_ref, row_acc, *,
                            confidence, smooth_val, padding_idx, xlogy_const,
                            v_total, num_col_tiles, pad_col_tile, ragged_v,
                            use_bf16_compute):
    j = pl.program_id(1)

    @pl.when(j == 0)
    def _():
        row_acc[...] = jnp.zeros_like(row_acc)

    x = x_ref[...]
    cdt = jnp.bfloat16 if (use_bf16_compute and x.dtype == jnp.bfloat16) \
        else jnp.float32
    x = x.astype(cdt)
    t = t_ref[...]                                            # (TN, 1) int32
    tn, tv = x.shape

    col = jax.lax.broadcasted_iota(jnp.int32, (tn, tv), 1)    # local column ids
    off = j * tv                                              # global col offset

    neg_conf = jnp.asarray(-confidence, cdt)
    neg_smooth = jnp.asarray(-smooth_val, cdt)
    zero = jnp.asarray(0.0, cdt)

    def accum(mask_pad_col, mask_oob_col):
        # c = -true_dist (row mask deferred to finalize).
        c = jnp.where(col == (t - off), neg_conf, neg_smooth)
        if mask_pad_col:
            c = jnp.where(col == (padding_idx - off), zero, c)
        prod = c * x
        if mask_oob_col:
            # Mask the PRODUCT (not just c): OOB x lanes may be Inf/NaN and
            # 0 * Inf = NaN would poison the lane reduce.
            prod = jnp.where(col < (v_total - off), prod, zero)
        # Lane reduce (XLU) with f32 accumulation.
        row_acc[...] += jnp.sum(prod.astype(jnp.float32), axis=1, keepdims=True)

    last_tile = num_col_tiles - 1
    if num_col_tiles == 1:
        accum(True, ragged_v)
    else:
        # Only the tile containing the padding column (and, if V is ragged,
        # the last tile) pays for the extra compare/select; everything else
        # runs the minimal hot path.
        specials = {pad_col_tile: [True, False]}
        if ragged_v:
            specials.setdefault(last_tile, [False, False])[1] = True
        for tile_idx, (mp, mo) in specials.items():
            @pl.when(j == tile_idx)
            def _(mp=mp, mo=mo):
                accum(mp, mo)
        not_special = None
        for tile_idx in specials:
            pred = j != tile_idx
            not_special = pred if not_special is None else (not_special & pred)

        @pl.when(not_special)
        def _():
            accum(False, False)

    @pl.when(j == last_tile)
    def _():
        # Add the analytic sum_c td*log(td) per non-padded row, zero out rows
        # whose target is padding_idx (this also covers the padded rows of a
        # ragged last N tile, since their target was padded with padding_idx),
        # then collapse to this N tile's partial loss.
        valid = t != padding_idx
        per_row = jnp.where(valid, row_acc[...] + jnp.float32(xlogy_const),
                            jnp.float32(0.0))
        o_ref[...] = jnp.sum(per_row).reshape(1, 1, 1)


def label_smoothing_loss(x, target, *, size, padding_idx=0, smoothing=0.0,
                         row_tile=None, col_tile=None, bf16_compute=None):
    """Equivalent of LabelSmoothing(size, padding_idx, smoothing)(x, target)."""
    n, v = x.shape
    assert v == size, "x.shape[1] must equal size"

    confidence = 1.0 - smoothing
    # TODO(synk): size <= 2 divides by zero in the PyTorch module; guarded here.
    smooth_val = smoothing / (size - 2) if size > 2 else 0.0
    # sum_c td*log(td) for any non-padded row is a constant (0*log0 := 0).
    xlogy_const = _xlogx(confidence) + (size - 2) * _xlogx(smooth_val)

    itemsize = jnp.dtype(x.dtype).itemsize
    vmem_cap = _vmem_capacity_bytes()
    vmem_limit = min(vmem_cap // 2, 64 * 1024 * 1024)

    # --- V tiling: single full-width block for moderate vocabs, 1024-lane
    # (multiple-of-128) tiles for large vocabs.  Ragged V is masked in-kernel.
    if col_tile is None:
        col_tile = v if v <= 8192 else 1024
    if col_tile != v:
        assert col_tile % 128 == 0, "col_tile must be a multiple of 128"
    num_col_tiles = _cdiv(v, col_tile)
    ragged_v = (v % col_tile) != 0
    pad_col_tile = padding_idx // col_tile

    # --- N tiling: ~8 MiB x blocks, rows a multiple of 8, capped so that the
    # "parallel" N axis has >= 2 tiles (v7x megacore) and blocks stay well
    # inside the per-generation VMEM budget.  Ragged N is masked via the
    # padded target array + finalize row mask.
    if row_tile is None:
        block_bytes = min(8 * 1024 * 1024, vmem_limit // 4)
        rows = max(8, block_bytes // (col_tile * itemsize))
        rows = min(rows, 8192, _round_up(n, 8))
        if n > 8:
            rows = min(rows, _round_up(_cdiv(n, 2), 8))
        row_tile = max(8, (rows // 8) * 8)
    assert row_tile % 8 == 0 or row_tile == n, \
        "row_tile must be a multiple of 8 (or equal to n)"
    num_row_tiles = _cdiv(n, row_tile)

    # Only the tiny target array is padded (padding_idx => padded rows are
    # masked exactly like real padding rows).  x is NOT padded/copied.
    n_pad = num_row_tiles * row_tile
    target2d = target.reshape(n, 1).astype(jnp.int32)
    if n_pad != n:
        target2d = jnp.pad(target2d, ((0, n_pad - n), (0, 0)),
                           constant_values=padding_idx)

    if bf16_compute is None:
        bf16_compute = (x.dtype == jnp.bfloat16)

    grid = (num_row_tiles, num_col_tiles)

    kernel = functools.partial(
        _label_smoothing_kernel,
        confidence=confidence,
        smooth_val=smooth_val,
        padding_idx=padding_idx,
        xlogy_const=xlogy_const,
        v_total=v,
        num_col_tiles=num_col_tiles,
        pad_col_tile=pad_col_tile,
        ragged_v=ragged_v,
        use_bf16_compute=bf16_compute,
    )

    partials = pl.pallas_call(
        kernel,
        out_shape=jax.ShapeDtypeStruct((num_row_tiles, 1, 1), jnp.float32),
        grid_spec=pltpu.PrefetchScalarGridSpec(
            num_scalar_prefetch=0,
            grid=grid,
            in_specs=[
                pl.BlockSpec((row_tile, col_tile), lambda i, j: (i, j)),
                pl.BlockSpec((row_tile, 1), lambda i, j: (i, 0)),
            ],
            out_specs=pl.BlockSpec((1, 1, 1), lambda i, j: (i, 0, 0)),
            scratch_shapes=[pltpu.VMEM((row_tile, 1), jnp.float32)],
        ),
        compiler_params=pltpu.CompilerParams(
            dimension_semantics=("parallel", "arbitrary"),
            vmem_limit_bytes=vmem_limit,
        ),
    )(x, target2d)

    # Per-N-tile partial sums -> final scalar in the wrapper.
    return jnp.sum(partials)


def _reference_loss(x, target, *, size, padding_idx=0, smoothing=0.0):
    """Pure-JAX reference mirroring the PyTorch module semantics."""
    n, v = x.shape
    confidence = 1.0 - smoothing
    smooth_val = smoothing / (size - 2) if size > 2 else 0.0
    col = jnp.arange(v)[None, :]
    t = target[:, None]
    td = jnp.where(col == t, confidence, smooth_val).astype(jnp.float32)
    td = jnp.where(col == padding_idx, 0.0, td)
    td = jnp.where(t == padding_idx, 0.0, td)
    xlogy = jnp.where(td > 0.0, td * jnp.log(td), 0.0)
    return jnp.sum(xlogy - td * x.astype(jnp.float32))


if __name__ == "__main__":
    PADDING_IDX = 0
    SMOOTHING = 0.1
    key = jax.random.PRNGKey(0)
    k1, k2, k3, k4, k5, k6 = jax.random.split(key, 6)

    # Case 1: basic toy problem (N=16 tokens, vocab=32), auto-tiled f32.
    N1, V1 = 16, 32
    x1 = jax.nn.log_softmax(jax.random.normal(k1, (N1, V1), jnp.float32), axis=-1)
    t1 = jax.random.randint(k2, (N1,), 0, V1, dtype=jnp.int32)
    t1 = t1.at[1].set(PADDING_IDX).at[5].set(PADDING_IDX)
    loss1 = jax.block_until_ready(
        label_smoothing_loss(x1, t1, size=V1, padding_idx=PADDING_IDX,
                             smoothing=SMOOTHING))
    ref1 = _reference_loss(x1, t1, size=V1, padding_idx=PADDING_IDX,
                           smoothing=SMOOTHING)
    np.testing.assert_allclose(np.asarray(loss1), np.asarray(ref1),
                               rtol=1e-5, atol=1e-5)

    # Case 2: ragged N and V with forced small tiles (no x padding!) to
    # exercise in-kernel column masking, row masking, multi-tile V reduction
    # and multi-N-tile partial sums.
    N2, V2 = 23, 160
    x2 = jax.nn.log_softmax(jax.random.normal(k3, (N2, V2), jnp.float32), axis=-1)
    t2 = jax.random.randint(k4, (N2,), 0, V2, dtype=jnp.int32)
    t2 = t2.at[0].set(PADDING_IDX).at[7].set(PADDING_IDX)
    loss2 = jax.block_until_ready(
        label_smoothing_loss(x2, t2, size=V2, padding_idx=PADDING_IDX,
                             smoothing=SMOOTHING, row_tile=8, col_tile=128))
    ref2 = _reference_loss(x2, t2, size=V2, padding_idx=PADDING_IDX,
                           smoothing=SMOOTHING)
    np.testing.assert_allclose(np.asarray(loss2), np.asarray(ref2),
                               rtol=1e-5, atol=1e-5)

    # Case 3: bf16 inputs with ragged N and V, bf16 hot-path compute,
    # padding-column tile != last tile (hoisted-mask branches all exercised).
    N3, V3 = 30, 1000
    x3 = jax.nn.log_softmax(
        jax.random.normal(k5, (N3, V3), jnp.float32), axis=-1
    ).astype(jnp.bfloat16)
    t3 = jax.random.randint(k6, (N3,), 0, V3, dtype=jnp.int32)
    t3 = t3.at[2].set(PADDING_IDX).at[11].set(PADDING_IDX)
    loss3 = jax.block_until_ready(
        label_smoothing_loss(x3, t3, size=V3, padding_idx=PADDING_IDX,
                             smoothing=SMOOTHING, col_tile=128))
    ref3 = _reference_loss(x3, t3, size=V3, padding_idx=PADDING_IDX,
                           smoothing=SMOOTHING)
    np.testing.assert_allclose(np.asarray(loss3), np.asarray(ref3),
                               rtol=2e-2, atol=1e-1)

    print("KERNEL_OK")
</pallas_src>

<mosaic_0001>
module attributes {stable_mosaic.version = 11 : i64} {
  func.func @_label_smoothing_kernel(%arg0: i32, %arg1: i32, %arg2: memref<8x32xf32, #tpu.memory_space<vmem>>, %arg3: memref<8x1xi32, #tpu.memory_space<vmem>>, %arg4: memref<1x1x1xf32, #tpu.memory_space<vmem>>, %arg5: memref<8x1xf32, #tpu.memory_space<vmem>>) attributes {dimension_semantics = [#tpu.dimension_semantics<parallel>, #tpu.dimension_semantics<arbitrary>], iteration_bounds = array<i64: 2, 1>, scalar_prefetch = 0 : i64, scratch_operands = 1 : i64, tpu.core_type = #tpu.core_type<tc>, window_params = [{transform_indices = @transform_0, window_bounds = array<i64: 8, 32>}, {transform_indices = @transform_1, window_bounds = array<i64: 8, 1>}, {transform_indices = @transform_2, window_bounds = array<i64: 1, 1, 1>}]} {
    %c0_i32 = arith.constant 0 : i32
    %0 = arith.cmpi eq, %arg1, %c0_i32 : i32
    %1 = arith.extui %0 : i1 to i32
    %c0_i32_0 = arith.constant 0 : i32
    %2 = arith.cmpi ne, %1, %c0_i32_0 : i32
    scf.if %2 {
      %cst_14 = arith.constant 0.000000e+00 : f32
      %28 = vector.broadcast %cst_14 : f32 to vector<8x1xf32>
      %c0_15 = arith.constant 0 : index
      %c0_16 = arith.constant 0 : index
      %29 = vector.load %arg5[%c0_15, %c0_16] : memref<8x1xf32, #tpu.memory_space<vmem>>, vector<8x1xf32>
      tpu.vector_store %arg5[%c0_15, %c0_16], %28 {strides = array<i32>} : memref<8x1xf32, #tpu.memory_space<vmem>>, vector<8x1xf32>,
    } else {
    }
    %c0 = arith.constant 0 : index
    %c0_1 = arith.constant 0 : index
    %3 = vector.load %arg2[%c0, %c0_1] : memref<8x32xf32, #tpu.memory_space<vmem>>, vector<8x32xf32>
    %c0_2 = arith.constant 0 : index
    %c0_3 = arith.constant 0 : index
    %4 = vector.load %arg3[%c0_2, %c0_3] : memref<8x1xi32, #tpu.memory_space<vmem>>, vector<8x1xi32>
    %5 = tpu.iota {dimensions = array<i32: 1>} : vector<8x32xi32>
    %c32_i32 = arith.constant 32 : i32
    %6 = arith.muli %arg1, %c32_i32 : i32
    %7 = vector.broadcast %6 : i32 to vector<8x1xi32>
    %8 = arith.subi %4, %7 : vector<8x1xi32>
    %9 = vector.broadcast %8 : vector<8x1xi32> to vector<8x32xi32>
    %10 = arith.cmpi eq, %5, %9 : vector<8x32xi32>
    %cst = arith.constant -0.899999976 : f32
    %cst_4 = arith.constant -0.00333333341 : f32
    %11 = vector.broadcast %cst : f32 to vector<8x32xf32>
    %12 = vector.broadcast %cst_4 : f32 to vector<8x32xf32>
    %13 = arith.select %10, %11, %12 : vector<8x32xi1>, vector<8x32xf32>
    %c0_i32_5 = arith.constant 0 : i32
    %14 = arith.subi %c0_i32_5, %6 : i32
    %15 = vector.broadcast %14 : i32 to vector<8x32xi32>
    %16 = arith.cmpi eq, %5, %15 : vector<8x32xi32>
    %cst_6 = arith.constant 0.000000e+00 : f32
    %17 = vector.broadcast %cst_6 : f32 to vector<8x32xf32>
    %18 = arith.select %16, %17, %13 : vector<8x32xi1>, vector<8x32xf32>
    %19 = arith.mulf %18, %3 : vector<8x32xf32>
    %c0_7 = arith.constant 0 : index
    %c0_8 = arith.constant 0 : index
    %20 = vector.load %arg5[%c0_7, %c0_8] : memref<8x1xf32, #tpu.memory_space<vmem>>, vector<8x1xf32>
    %cst_9 = arith.constant dense<0.000000e+00> : vector<8xf32>
    %21 = vector.multi_reduction <add>, %19, %cst_9 [1] : vector<8x32xf32> to vector<8xf32>
    %22 = vector.shape_cast %21 : vector<8xf32> to vector<8x1xf32>
    %23 = arith.addf %20, %22 : vector<8x1xf32>
    %c0_10 = arith.constant 0 : index
    %c0_11 = arith.constant 0 : index
    %24 = vector.load %arg5[%c0_10, %c0_11] : memref<8x1xf32, #tpu.memory_space<vmem>>, vector<8x1xf32>
    tpu.vector_store %arg5[%c0_10, %c0_11], %23 {strides = array<i32>} : memref<8x1xf32, #tpu.memory_space<vmem>>, vector<8x1xf32>,
    %c0_i32_12 = arith.constant 0 : i32
    %25 = arith.cmpi eq, %arg1, %c0_i32_12 : i32
    %26 = arith.extui %25 : i1 to i32
    %c0_i32_13 = arith.constant 0 : i32
    %27 = arith.cmpi ne, %26, %c0_i32_13 : i32
    scf.if %27 {
      %c0_i32_14 = arith.constant 0 : i32
      %28 = vector.broadcast %c0_i32_14 : i32 to vector<8x1xi32>
      %29 = arith.cmpi ne, %4, %28 : vector<8x1xi32>
      %c0_15 = arith.constant 0 : index
      %c0_16 = arith.constant 0 : index
      %30 = vector.load %arg5[%c0_15, %c0_16] : memref<8x1xf32, #tpu.memory_space<vmem>>, vector<8x1xf32>
      %cst_17 = arith.constant -0.665202737 : f32
      %31 = vector.broadcast %cst_17 : f32 to vector<8x1xf32>
      %32 = arith.addf %30, %31 : vector<8x1xf32>
      %cst_18 = arith.constant 0.000000e+00 : f32
      %33 = vector.broadcast %cst_18 : f32 to vector<8x1xf32>
      %34 = arith.select %29, %32, %33 : vector<8x1xi1>, vector<8x1xf32>
      %35 = vector.shape_cast %34 : vector<8x1xf32> to vector<1x8x1xf32>
      %cst_19 = arith.constant dense<0.000000e+00> : vector<1xf32>
      %36 = vector.multi_reduction <add>, %35, %cst_19 [1, 2] : vector<1x8x1xf32> to vector<1xf32>
      %37 = vector.shape_cast %36 : vector<1xf32> to vector<1x1x1xf32>
      %38 = vector.extract %37[0, 0, 0] : f32 from vector<1x1x1xf32>
      %39 = vector.broadcast %38 : f32 to vector<1x1x1xf32>
      %c0_20 = arith.constant 0 : index
      %c0_21 = arith.constant 0 : index
      %c0_22 = arith.constant 0 : index
      %40 = vector.load %arg4[%c0_20, %c0_21, %c0_22] : memref<1x1x1xf32, #tpu.memory_space<vmem>>, vector<1x1x1xf32>
      tpu.vector_store %arg4[%c0_20, %c0_21, %c0_22], %39 {strides = array<i32>} : memref<1x1x1xf32, #tpu.memory_space<vmem>>, vector<1x1x1xf32>,
    } else {
    }
    return
  }
  func.func @transform_0(%arg0: i32, %arg1: i32) -> (i32, i32) {
    %c0_i32 = arith.constant 0 : i32
    return %arg0, %arg1 : i32, i32
  }
  func.func @transform_1(%arg0: i32, %arg1: i32) -> (i32, i32) {
    %c0_i32 = arith.constant 0 : i32
    %c0_i32_0 = arith.constant 0 : i32
    return %arg0, %c0_i32 : i32, i32
  }
  func.func @transform_2(%arg0: i32, %arg1: i32) -> (i32, i32, i32) {
    %c0_i32 = arith.constant 0 : i32
    %c0_i32_0 = arith.constant 0 : i32
    %c0_i32_1 = arith.constant 0 : i32
    return %arg0, %c0_i32, %c0_i32_0 : i32, i32, i32
  }
}

</mosaic_0001>

<llo_original>
// kernel: tpu_custom_call.1
$region0: #{tpu_custom_call.1}
  #allocation0 [shape = 'u32[]', space=smem, size = 0x4, offset = 0x4, fixed_abs, tag = 'smem constant byte address 0x4 - core index']
  #allocation1 [shape = 'u32[72,128]{1,0:T(1,128)}', space=vmem, size = 0x9000, scoped, tag = 'internal scratch']
  #allocation2 [shape = 'f32[8,1]{1,0:T(8,128)}', space=vmem, size = 0x1000, scoped, tag = 'scratch operand']
  %s0 = inlined_call_operand.vmem [shape: f32[16,32], index: 0, kind: input, shape index: {}]
  %s1 = inlined_call_operand.vmem [shape: s32[16,1], index: 1, kind: input, shape index: {}]
  %s2 = inlined_call_operand.vmem [shape: f32[2,1,1], index: 2, kind: output, shape index: {}]
  %s3 = sld [smem:[#allocation0]]
  $region49: #{tpu_custom_call.1} parent=0
    _
  %s5 = ssub.s32 1, %s3
  %s6 = scalar_select 0, %s5, %s3
  loop: start=0, step=1, limit=4
  $region2: #{tpu_custom_call.1} parent=0 // loop_pre_header
    _
  $region3: #{tpu_custom_call.1} parent=0 // loop_header
    %s8 = sphi 0, %s12
    %p9 = scmp.ge.s32.totalorder %s8, 4
    %s15 = sphi 0, %s27
    %s16 = sphi 0, %s23
    %s17 = sphi 0, %s15
    %s18 = sphi 0, %s16
    %s19 = sphi 0, %s17
    %s20 = sphi 0, %s18
    %s32 = sphi 0, %s34
    %s35 = sphi 0, %s32
    %s36 = sphi 0, %s35
    %s52 = sphi 0, %s36
    %s58 = sphi 0, %s60
    %s61 = sphi 0, %s58
    %s62 = sphi 0, %s61
    %s78 = sphi 0, %s62
    %s84 = sphi 0, %s86
    %s87 = sphi 0, %s84
    %s88 = sphi 0, %s87
    %s104 = sphi 0, %s88
  $region4: #{tpu_custom_call.1} parent=0 // loop_header_branch
    %11 = sbr.rel (%p9) target = $region8
  $region5: #{tpu_custom_call.1} parent=0 // loop_body
    %s13 = ssub.s32 %s8, 1
    %s14 = ssub.s32 %s8, 2
    %s21 = sadd.s32 1, %s16
    %p22 = scmp.ge.s32.totalorder %s21, 1
    %s23 = scalar_select %p22, 0, %s21
    %s24 = sadd.s32 1, %s15
    %s25 = scalar_select %p22, %s24, %s15
    %p26 = scmp.ge.s32.totalorder %s25, 2
    %s27 = scalar_select %p26, 0, %s25
    %s28 = ssub.s32 %s15, %s27
    %s29 = ssub.s32 %s16, %s23
    %s30 = sor.u32 %s28, %s29
    %p31 = scmp.eq.s32.totalorder %s30, 0
    %s33 = sadd.s32 %s32, 1
    %s34 = scalar_select %p31, %s32, %s33
    %p37 = pneg %p31
    %p38 = scmp.eq.s32.totalorder %s8, 1
    %p39 = por %p37, %p38
    %p40 = scmp.ne.s32.totalorder %s32, %s35
    %p41 = scmp.eq.s32.totalorder %s8, 0
    %p42 = por %p40, %p41
    %p43 = scmp.ne.s32.totalorder %s32, %s35
    %p44 = scmp.eq.s32.totalorder %s13, 1
    %p45 = por %p43, %p44
    %p46 = scmp.ne.s32.totalorder %s35, %s36
    %p47 = scmp.eq.s32.totalorder %s13, 0
    %p48 = por %p46, %p47
    %p49 = scmp.ne.s32.totalorder %s35, %s36
    %p50 = scmp.eq.s32.totalorder %s14, 1
    %p51 = por %p49, %p50
    %p53 = scmp.ne.s32.totalorder %s36, %s52
    %p54 = scmp.eq.s32.totalorder %s14, 0
    %p55 = por %p53, %p54
    %s56 = ssub.s32 %s15, %s27
    %p57 = scmp.eq.s32.totalorder %s56, 0
    %s59 = sadd.s32 %s58, 1
    %s60 = scalar_select %p57, %s58, %s59
    %p63 = pneg %p57
    %p64 = scmp.eq.s32.totalorder %s8, 1
    %p65 = por %p63, %p64
    %p66 = scmp.ne.s32.totalorder %s58, %s61
    %p67 = scmp.eq.s32.totalorder %s8, 0
    %p68 = por %p66, %p67
    %p69 = scmp.ne.s32.totalorder %s58, %s61
    %p70 = scmp.eq.s32.totalorder %s13, 1
    %p71 = por %p69, %p70
    %p72 = scmp.ne.s32.totalorder %s61, %s62
    %p73 = scmp.eq.s32.totalorder %s13, 0
    %p74 = por %p72, %p73
    %p75 = scmp.ne.s32.totalorder %s61, %s62
    %p76 = scmp.eq.s32.totalorder %s14, 1
    %p77 = por %p75, %p76
    %p79 = scmp.ne.s32.totalorder %s62, %s78
    %p80 = scmp.eq.s32.totalorder %s14, 0
    %p81 = por %p79, %p80
    %s82 = ssub.s32 %s15, %s27
    %p83 = scmp.eq.s32.totalorder %s82, 0
    %s85 = sadd.s32 %s84, 1
    %s86 = scalar_select %p83, %s84, %s85
    %p89 = pneg %p83
    %p90 = scmp.eq.s32.totalorder %s8, 1
    %p91 = por %p89, %p90
    %p92 = scmp.ne.s32.totalorder %s84, %s87
    %p93 = scmp.eq.s32.totalorder %s8, 0
    %p94 = por %p92, %p93
    %p95 = scmp.ne.s32.totalorder %s84, %s87
    %p96 = scmp.eq.s32.totalorder %s13, 1
    %p97 = por %p95, %p96
    %p98 = scmp.ne.s32.totalorder %s87, %s88
    %p99 = scmp.eq.s32.totalorder %s13, 0
    %p100 = por %p98, %p99
    %p101 = scmp.ne.s32.totalorder %s87, %s88
    %p102 = scmp.eq.s32.totalorder %s14, 1
    %p103 = por %p101, %p102
    %p105 = scmp.ne.s32.totalorder %s88, %s104
    %p106 = scmp.eq.s32.totalorder %s14, 0
    %p107 = por %p105, %p106
    %p108 = scmp.le.s32.totalorder 1, %s8
    %p109 = scmp.lt.s32.totalorder %s8, 3
    %p110 = pnand %p108, %p109
    %p111 = pneg %p110
    // Predicated region
    $region9: #{tpu_custom_call.1} parent=5 // pred_check
      _
    $region10: #{tpu_custom_call.1} parent=5 // pred_check_branch
      %113 = sbr.rel (%p110) target = $region12
    $region11: #{tpu_custom_call.1} parent=5 // pred_region
      %s114 = ssub.s32 %s8, 1
    $region12: #{tpu_custom_call.1} parent=5 // pred_fallthru
      _
    %p115 = scmp.lt.s32.totalorder %s8, 2
    // Predicated region
    $region13: #{tpu_custom_call.1} parent=5 // pred_check
      %p116 = pneg %p115
    $region14: #{tpu_custom_call.1} parent=5 // pred_check_branch
      %118 = sbr.rel (%p116) target = $region16
    $region15: #{tpu_custom_call.1} parent=5 // pred_region
      // Predicated region
      $region17: #{tpu_custom_call.1} parent=15 // pred_check
        %p119 = pneg %p42
      $region18: #{tpu_custom_call.1} parent=15 // pred_check_branch
        %121 = sbr.rel (%p119) target = $region20
      $region19: #{tpu_custom_call.1} parent=15 // pred_region
        %p122 = scmp.lt.s32.totalorder %s15, 1
        %s123 = scalar_select %p122, %s15, 1
        %p124 = scmp.lt.s32.totalorder %s16, 0
        %s125 = scalar_select %p124, %s16, 0
        %s126 = sadd.s32 %s125, %s123
        %s127 = smul.addr %s126, 8
        %s128 = scalar_lea.vmem %s0, %s127
      $region20: #{tpu_custom_call.1} parent=15 // pred_fallthru
        _
      // Predicated region
      $region21: #{tpu_custom_call.1} parent=15 // pred_check
        %p129 = pneg %p68
      $region22: #{tpu_custom_call.1} parent=15 // pred_check_branch
        %131 = sbr.rel (%p129) target = $region24
      $region23: #{tpu_custom_call.1} parent=15 // pred_region
        %p132 = scmp.lt.s32.totalorder %s15, 1
        %s133 = scalar_select %p132, %s15, 1
        %s134 = smul.addr %s133, 8
        %s135 = scalar_lea.vmem %s1, %s134
      $region24: #{tpu_custom_call.1} parent=15 // pred_fallthru
        _
    $region16: #{tpu_custom_call.1} parent=5 // pred_fallthru
      _
    %p136 = scmp.le.s32.totalorder 1, %s8
    %p137 = scmp.lt.s32.totalorder %s8, 3
    %p138 = pnand %p136, %p137
    %p139 = pneg %p138
    // Predicated region
    $region25: #{tpu_custom_call.1} parent=5 // pred_check
      _
    $region26: #{tpu_custom_call.1} parent=5 // pred_check_branch
      %141 = sbr.rel (%p138) target = $region28
    $region27: #{tpu_custom_call.1} parent=5 // pred_region
      %s142 = ssub.s32 %s8, 1
      %p143 = scmp.lt.s32.totalorder %s17, 1
      %s144 = scalar_select %p143, %s17, 1
      %p145 = scmp.lt.s32.totalorder %s18, 0
      %s146 = scalar_select %p145, %s18, 0
      %s147 = sadd.s32 %s146, %s144
      %s148 = smul.addr %s147, 8
      %s149 = scalar_lea.vmem %s0, %s148
      %p150 = pneg %p48
      %p151 = pneg %p45
      %p152 = scmp.lt.s32.totalorder %s17, 1
      %s153 = scalar_select %p152, %s17, 1
      %s154 = smul.addr %s153, 8
      %s155 = scalar_lea.vmem %s1, %s154
      %p156 = pneg %p74
      %p157 = pneg %p71
      %p158 = pneg %p100
      %p159 = pneg %p97
      %p160 = scmp.lt.s32.totalorder %s17, 1
      %s161 = scalar_select %p160, %s17, 1
      %s162 = scalar_lea.vmem %s2, %s161
      %p163 = scmp.lt.s32.totalorder %s17, 1
      %s164 = scalar_select %p163, %s17, 1
      %p165 = scmp.lt.s32.totalorder %s18, 0
      %s166 = scalar_select %p165, %s18, 0
      %s167 = sadd.s32 %s166, %s164
      %s168 = smul.addr %s167, 8
      %s169 = scalar_lea.vmem %s0, %s168
      %p170 = scmp.lt.s32.totalorder %s17, 1
      %s171 = scalar_select %p170, %s17, 1
      %s172 = smul.addr %s171, 8
      %s173 = scalar_lea.vmem %s1, %s172
      %p174 = scmp.lt.s32.totalorder %s17, 1
      %s175 = scalar_select %p174, %s17, 1
      %s176 = scalar_lea.vmem %s2, %s175
      %p177 = scmp.eq.s32.totalorder %s18, 0
      // Predicated region
      $region29: #{tpu_custom_call.1} parent=27 // pred_check
        %p178 = pneg %p177
      $region30: #{tpu_custom_call.1} parent=27 // pred_check_branch
        %180 = sbr.rel (%p178) target = $region32
      $region31: #{tpu_custom_call.1} parent=27 // pred_region
        %vm181 = vcmask 7168
        %182 = vst.msk [vmem:[#allocation2] sm:$0xff] %vm181, 0.0
      $region32: #{tpu_custom_call.1} parent=27 // pred_fallthru
        _
      %v183 = vld [vmem:[%s169] sm:$0xff]
      %v184 = vld [vmem:[%s173] sm:$0xff]
      %v185 = vlaneseq
      %v186 = vand.u32 %v185, 127
      %s187 = smul.u32 %s18, 32
      %v188 = vstv %s187
      %v189 = vsub.s32 %v184, %v188
      %190 = vset.pattern.permute.xlu0 0
      %191 = vperm.xlu0 %190, %v189
      %v192 = vpop.permute.xlu0 %191
      %vm193 = vcmp.eq.s32.totalorder %v186, %v192
      %v194 = vsel %vm193, -0.9, -0.0033333334
      %s195 = ssub.s32 0, %s187
      %v196 = vstv %s195
      %vm197 = vcmp.eq.s32.totalorder %v186, %v196
      %v198 = vsel %vm197, 0.0, %v194
      %v199 = vmul.f32 %v198, %v183
      %v200 = vld [vmem:[#allocation2] sm:$0xff]
      %vm201 = vcmask 261120
      %v202 = vsel %vm201, %v199, 0.0
      %203 = vadd.xlane.f32.xlu0 %v202
      %v204 = vpop.xlane.xlu0 %203
      %v205 = vadd.f32 %v200, %v204
      %vm206 = vcmask 7168
      %207 = vst.msk [vmem:[#allocation2] sm:$0xff] %vm206, %v205
      // Predicated region
      $region33: #{tpu_custom_call.1} parent=27 // pred_check
        %p208 = pneg %p177
      $region34: #{tpu_custom_call.1} parent=27 // pred_check_branch
        %210 = sbr.rel (%p208) target = $region36
      $region35: #{tpu_custom_call.1} parent=27 // pred_region
        %vm211 = vcmp.ne.s32.totalorder %v184, 0
        %v212 = vld [vmem:[#allocation2] sm:$0xff]
        %v213 = vadd.f32 %v212, -0.66520274
        %v214 = vsel %vm211, %v213, 0.0
        %v215 = vsel %vm206, %v214, 0.0
        %216 = vadd.xlane.f32.xlu0 %v215
        %v217 = vpop.xlane.xlu0 %216
        %v218 = vrot.slane %v217, 4
        %v219 = vadd.f32 %v217, %v218
        %v220 = vrot.slane %v219, 2
        %v221 = vadd.f32 %v219, %v220
        %v222 = vrot.slane %v221, 1
        %v223 = vadd.f32 %v221, %v222
        %s224 = vtos %v223
        %v225 = vstv %s224
        %vm226 = vcmask 0
        %227 = vst.msk [vmem:[%s176] sm:$0x1] %vm226, %v225
      $region36: #{tpu_custom_call.1} parent=27 // pred_fallthru
        _
      %p228 = scmp.lt.s32.totalorder %s17, 1
      %s229 = scalar_select %p228, %s17, 1
      %s230 = scalar_lea.vmem %s2, %s229
      // Predicated region
      $region37: #{tpu_custom_call.1} parent=27 // pred_check
        %p231 = pneg %p97
      $region38: #{tpu_custom_call.1} parent=27 // pred_check_branch
        %233 = sbr.rel (%p231) target = $region40
      $region39: #{tpu_custom_call.1} parent=27 // pred_region
        _
      $region40: #{tpu_custom_call.1} parent=27 // pred_fallthru
        _
    $region28: #{tpu_custom_call.1} parent=5 // pred_fallthru
      _
    %p234 = scmp.le.s32.totalorder 2, %s8
    // Predicated region
    $region41: #{tpu_custom_call.1} parent=5 // pred_check
      %p235 = pneg %p234
    $region42: #{tpu_custom_call.1} parent=5 // pred_check_branch
      %237 = sbr.rel (%p235) target = $region44
    $region43: #{tpu_custom_call.1} parent=5 // pred_region
      %s238 = ssub.s32 %s8, 2
      // Predicated region
      $region45: #{tpu_custom_call.1} parent=43 // pred_check
        %p239 = pneg %p103
      $region46: #{tpu_custom_call.1} parent=43 // pred_check_branch
        %241 = sbr.rel (%p239) target = $region48
      $region47: #{tpu_custom_call.1} parent=43 // pred_region
        %p242 = scmp.lt.s32.totalorder %s19, 1
        %s243 = scalar_select %p242, %s19, 1
        %s244 = scalar_lea.vmem %s2, %s243
      $region48: #{tpu_custom_call.1} parent=43 // pred_fallthru
        _
    $region44: #{tpu_custom_call.1} parent=5 // pred_fallthru
      _
  $region6: #{tpu_custom_call.1} parent=0 // loop_footer
    %s12 = sadd.s32 1, %s8
  $region7: #{tpu_custom_call.1} parent=0 // loop_footer_branch
    %7 = sbr.rel target = $region3
  $region8: #{tpu_custom_call.1} parent=0 // loop_exit
    _

</llo_original>
